<compile_context>
chip_gen: v5e
topology: v5e:2x2
jax: 0.10.0
libtpu: 0.0.40
codegen_flags: <defaults>
</compile_context>

<pallas_src>
import functools
import math

import jax
import jax.numpy as jnp
from jax.experimental import pallas as pl
from jax.experimental.pallas import tpu as pltpu


def _round_up(x, m):
    return ((x + m - 1) // m) * m


# --------------------------------------------------------------------------
# Pallas kernel 1: tiled matmul with fused bias (+ folded BN) and optional ReLU
# --------------------------------------------------------------------------
def _matmul_kernel(a_ref, b_ref, bias_ref, o_ref, acc_ref, *, act):
    @pl.when(pl.program_id(2) == 0)
    def _():
        acc_ref[...] = jnp.zeros_like(acc_ref)

    acc_ref[...] += jnp.dot(a_ref[...], b_ref[...],
                            preferred_element_type=jnp.float32)

    @pl.when(pl.program_id(2) == pl.num_programs(2) - 1)
    def _():
        r = acc_ref[...] + bias_ref[...]
        if act == "relu":
            r = jnp.maximum(r, 0.0)
        o_ref[...] = r.astype(o_ref.dtype)


def matmul_bias_act(a, b, bias, act="none", tn=128, tk=256):
    """(M, K) @ (K, N) + bias[N], optional fused ReLU.  f32 accumulation."""
    M, K = a.shape
    K2, N = b.shape
    assert K == K2
    tm = 128 if M >= 128 else _round_up(M, 8)
    Mp, Kp, Np = _round_up(M, tm), _round_up(K, tk), _round_up(N, tn)
    a_p = jnp.pad(a.astype(jnp.float32), ((0, Mp - M), (0, Kp - K)))
    b_p = jnp.pad(b.astype(jnp.float32), ((0, Kp - K), (0, Np - N)))
    bias_p = jnp.pad(bias.astype(jnp.float32).reshape(1, N),
                     ((0, 0), (0, Np - N)))
    grid = (Mp // tm, Np // tn, Kp // tk)
    out = pl.pallas_call(
        functools.partial(_matmul_kernel, act=act),
        out_shape=jax.ShapeDtypeStruct((Mp, Np), jnp.float32),
        grid_spec=pltpu.PrefetchScalarGridSpec(
            num_scalar_prefetch=0,
            grid=grid,
            in_specs=[
                pl.BlockSpec((tm, tk), lambda i, j, k: (i, k)),
                pl.BlockSpec((tk, tn), lambda i, j, k: (k, j)),
                pl.BlockSpec((1, tn), lambda i, j, k: (0, j)),
            ],
            out_specs=pl.BlockSpec((tm, tn), lambda i, j, k: (i, j)),
            scratch_shapes=[pltpu.VMEM((tm, tn), jnp.float32)],
        ),
        compiler_params=pltpu.CompilerParams(
            dimension_semantics=("parallel", "parallel", "arbitrary")),
    )(a_p, b_p, bias_p)
    return out[:M, :N]


# --------------------------------------------------------------------------
# Pallas kernel 2: fused per-(batch*head) self-attention (scores, softmax, PV)
# --------------------------------------------------------------------------
def _attn_kernel(q_ref, k_ref, v_ref, o_ref, *, scale, valid_len):
    q = q_ref[0].astype(jnp.float32)          # (Sp, Dh)
    k = k_ref[0].astype(jnp.float32)
    v = v_ref[0].astype(jnp.float32)
    s = jax.lax.dot_general(q, k, (((1,), (1,)), ((), ())),
                            preferred_element_type=jnp.float32) * scale
    col = jax.lax.broadcasted_iota(jnp.int32, s.shape, 1)
    s = jnp.where(col < valid_len, s, -1e30)   # mask padded key rows
    s = s - jnp.max(s, axis=-1, keepdims=True)
    p = jnp.exp(s)
    p = p / jnp.sum(p, axis=-1, keepdims=True)
    o_ref[0] = jnp.dot(p, v, preferred_element_type=jnp.float32).astype(o_ref.dtype)


def mha_attention(q, k, v, scale):
    """q, k, v: (BH, S, Dh) -> (BH, S, Dh); softmax over keys."""
    BH, S, Dh = q.shape
    Sp = max(8, _round_up(S, 8))
    pad = ((0, 0), (0, Sp - S), (0, 0))
    qp = jnp.pad(q.astype(jnp.float32), pad)
    kp = jnp.pad(k.astype(jnp.float32), pad)
    vp = jnp.pad(v.astype(jnp.float32), pad)
    out = pl.pallas_call(
        functools.partial(_attn_kernel, scale=scale, valid_len=S),
        out_shape=jax.ShapeDtypeStruct((BH, Sp, Dh), jnp.float32),
        grid_spec=pltpu.PrefetchScalarGridSpec(
            num_scalar_prefetch=0,
            grid=(BH,),
            in_specs=[pl.BlockSpec((1, Sp, Dh), lambda b: (b, 0, 0))] * 3,
            out_specs=pl.BlockSpec((1, Sp, Dh), lambda b: (b, 0, 0)),
        ),
        compiler_params=pltpu.CompilerParams(dimension_semantics=("parallel",)),
    )(qp, kp, vp)
    return out[:, :S, :]


# --------------------------------------------------------------------------
# Pallas kernel 3: LayerNorm over the last dim
# --------------------------------------------------------------------------
def _layernorm_kernel(x_ref, g_ref, b_ref, o_ref, *, eps):
    x = x_ref[...].astype(jnp.float32)
    mu = jnp.mean(x, axis=-1, keepdims=True)
    xc = x - mu
    var = jnp.mean(xc * xc, axis=-1, keepdims=True)
    y = xc * jax.lax.rsqrt(var + eps)
    o_ref[...] = (y * g_ref[...] + b_ref[...]).astype(o_ref.dtype)


def layer_norm(x2d, gamma, beta, eps=1e-5):
    R, D = x2d.shape
    Rp = _round_up(R, 8)
    xp = jnp.pad(x2d.astype(jnp.float32), ((0, Rp - R), (0, 0)))
    out = pl.pallas_call(
        functools.partial(_layernorm_kernel, eps=eps),
        out_shape=jax.ShapeDtypeStruct((Rp, D), jnp.float32),
        grid_spec=pltpu.PrefetchScalarGridSpec(
            num_scalar_prefetch=0,
            grid=(1,),
            in_specs=[
                pl.BlockSpec((Rp, D), lambda i: (0, 0)),
                pl.BlockSpec((1, D), lambda i: (0, 0)),
                pl.BlockSpec((1, D), lambda i: (0, 0)),
            ],
            out_specs=pl.BlockSpec((Rp, D), lambda i: (0, 0)),
        ),
    )(xp, gamma.reshape(1, D), beta.reshape(1, D))
    return out[:R]


# --------------------------------------------------------------------------
# NN building blocks (layout plumbing in JAX, compute in the Pallas kernels)
# --------------------------------------------------------------------------
def conv3x3(x, w, b, act="none"):
    """Conv2d(k=3, p=1) via im2col + Pallas matmul. x: (B,Cin,H,W), w: (Cout,Cin,3,3)."""
    B, Cin, H, W = x.shape
    Cout = w.shape[0]
    xp = jnp.pad(x, ((0, 0), (0, 0), (1, 1), (1, 1)))
    cols = [xp[:, :, di:di + H, dj:dj + W] for di in range(3) for dj in range(3)]
    patches = jnp.stack(cols, axis=2)                       # (B, Cin, 9, H, W)
    a = patches.transpose(0, 3, 4, 1, 2).reshape(B * H * W, Cin * 9)
    y = matmul_bias_act(a, w.reshape(Cout, Cin * 9).T, b, act=act)
    return y.reshape(B, H, W, Cout).transpose(0, 3, 1, 2)


def conv_block_apply(x, p):
    """Conv3x3 + BatchNorm2d(eval) + ReLU, with BN folded into the matmul epilogue."""
    eps = 1e-5
    scale = p["bn_g"] * jax.lax.rsqrt(p["bn_v"] + eps)
    shift = p["bn_b"] - p["bn_m"] * scale
    w = p["w"] * scale[:, None, None, None]
    b = p["b"] * scale + shift
    return conv3x3(x, w, b, act="relu")


def deconv2x2(x, w, b):
    """ConvTranspose2d(k=2, s=2) as a matmul.  x: (B,Cin,H,W), w: (Cin,Cout,2,2)."""
    B, Cin, H, W = x.shape
    Cout = w.shape[1]
    a = x.transpose(0, 2, 3, 1).reshape(B * H * W, Cin)
    y = matmul_bias_act(a, w.reshape(Cin, Cout * 4), jnp.repeat(b, 4))
    y = y.reshape(B, H, W, Cout, 2, 2).transpose(0, 3, 1, 4, 2, 5)
    return y.reshape(B, Cout, 2 * H, 2 * W)


def conv1x1(x, w, b):
    B, Cin, H, W = x.shape
    Cout = w.shape[0]
    a = x.transpose(0, 2, 3, 1).reshape(B * H * W, Cin)
    y = matmul_bias_act(a, w.reshape(Cout, Cin).T, b)
    return y.reshape(B, H, W, Cout).transpose(0, 3, 1, 2)


def bilinear_resize_align_corners(x, out_h, out_w):
    """F.interpolate(mode='bilinear', align_corners=True) for NCHW."""
    B, C, H, W = x.shape
    if (H, W) == (out_h, out_w):
        return x

    def coords(n_in, n_out):
        if n_out == 1:
            return jnp.zeros((1,), jnp.float32)
        return jnp.arange(n_out, dtype=jnp.float32) * ((n_in - 1) / (n_out - 1))

    ys, xs = coords(H, out_h), coords(W, out_w)
    y0 = jnp.floor(ys).astype(jnp.int32)
    y1 = jnp.minimum(y0 + 1, H - 1)
    wy = (ys - y0.astype(jnp.float32))[None, None, :, None]
    x0 = jnp.floor(xs).astype(jnp.int32)
    x1 = jnp.minimum(x0 + 1, W - 1)
    wx = (xs - x0.astype(jnp.float32))[None, None, None, :]
    top = x[:, :, y0, :] * (1.0 - wy) + x[:, :, y1, :] * wy
    return top[:, :, :, x0] * (1.0 - wx) + top[:, :, :, x1] * wx


def transformer_layer(x, p, num_heads):
    """Post-norm nn.TransformerEncoderLayer (gelu, eval-mode dropout).
    x: (S, Nb, D).  The reference passes (batch, num_patches, D) to a
    batch_first=False layer, so axis 0 is the attention axis — reproduced here."""
    S, Nb, D = x.shape
    Dh = D // num_heads
    x2 = x.reshape(S * Nb, D)

    qkv = matmul_bias_act(x2, p["in_w"], p["in_b"])            # (S*Nb, 3D)
    qkv = qkv.reshape(S, Nb, 3, num_heads, Dh)
    q, k, v = qkv[:, :, 0], qkv[:, :, 1], qkv[:, :, 2]         # (S, Nb, H, Dh)

    def to_bh(t):
        return t.transpose(1, 2, 0, 3).reshape(Nb * num_heads, S, Dh)

    o = mha_attention(to_bh(q), to_bh(k), to_bh(v), 1.0 / math.sqrt(Dh))
    o = o.reshape(Nb, num_heads, S, Dh).transpose(2, 0, 1, 3).reshape(S * Nb, D)
    o = matmul_bias_act(o, p["out_w"], p["out_b"])

    x2 = layer_norm(x2 + o, p["ln1_g"], p["ln1_b"])
    h = matmul_bias_act(x2, p["ff1_w"], p["ff1_b"])
    h = jax.nn.gelu(h, approximate=False)                      # exact (erf) GELU
    h = matmul_bias_act(h, p["ff2_w"], p["ff2_b"])
    x2 = layer_norm(x2 + h, p["ln2_g"], p["ln2_b"])
    return x2.reshape(S, Nb, D)


# --------------------------------------------------------------------------
# Parameter init (deterministic; shapes follow the PyTorch module)
# --------------------------------------------------------------------------
def init_params(key, cf):
    keys = iter(jax.random.split(key, 256))
    nk = lambda: next(keys)

    def dense(fan_in, shape):
        return (1.0 / math.sqrt(fan_in)) * jax.random.normal(nk(), shape, jnp.float32)

    D = cf["hidden_dim"]
    P = cf["patch_size"]
    C = cf["num_channels"]
    patch_dim = P * P * C

    params = {
        "patch_embed_w": dense(patch_dim, (patch_dim, D)),
        "patch_embed_b": jnp.zeros((D,), jnp.float32),
        # nn.Embedding positional table (module re-creates it in forward; fixed here)
        "pos_embed": 0.02 * jax.random.normal(nk(), (cf["num_patches"], D), jnp.float32),
    }

    def layer_p():
        return {
            "in_w": dense(D, (D, 3 * D)), "in_b": jnp.zeros((3 * D,), jnp.float32),
            "out_w": dense(D, (D, D)), "out_b": jnp.zeros((D,), jnp.float32),
            "ln1_g": jnp.ones((D,), jnp.float32), "ln1_b": jnp.zeros((D,), jnp.float32),
            "ln2_g": jnp.ones((D,), jnp.float32), "ln2_b": jnp.zeros((D,), jnp.float32),
            "ff1_w": dense(D, (D, cf["mlp_dim"])),
            "ff1_b": jnp.zeros((cf["mlp_dim"],), jnp.float32),
            "ff2_w": dense(cf["mlp_dim"], (cf["mlp_dim"], D)),
            "ff2_b": jnp.zeros((D,), jnp.float32),
        }

    layers = [layer_p() for _ in range(cf["num_layers"])]
    params["encoder"] = jax.tree_util.tree_map(lambda *xs: jnp.stack(xs), *layers)

    def conv_p(cin, cout):
        return {"w": dense(9 * cin, (cout, cin, 3, 3)),
                "b": jnp.zeros((cout,), jnp.float32),
                "bn_g": jnp.ones((cout,), jnp.float32),
                "bn_b": jnp.zeros((cout,), jnp.float32),
                "bn_m": jnp.zeros((cout,), jnp.float32),
                "bn_v": jnp.ones((cout,), jnp.float32)}

    def deconv_p(cin, cout):
        return {"w": dense(cin, (cin, cout, 2, 2)),
                "b": jnp.zeros((cout,), jnp.float32)}

    params["d1"] = deconv_p(D, 512)
    params["s1"] = [deconv_p(D, 512), conv_p(512, 512)]
    params["c1"] = [conv_p(1024, 512), conv_p(512, 512)]
    params["d2"] = deconv_p(512, 256)
    params["s2"] = [deconv_p(D, 256), conv_p(256, 256), deconv_p(256, 256), conv_p(256, 256)]
    params["c2"] = [conv_p(512, 256), conv_p(256, 256)]
    params["d3"] = deconv_p(256, 128)
    params["s3"] = [deconv_p(D, 128), conv_p(128, 128), deconv_p(128, 128), conv_p(128, 128),
                    deconv_p(128, 128), conv_p(128, 128)]
    params["c3"] = [conv_p(256, 128), conv_p(128, 128)]
    params["d4"] = deconv_p(128, 64)
    params["s4"] = [conv_p(C, 64), conv_p(64, 64)]
    params["c4"] = [conv_p(128, 64), conv_p(64, 64)]
    params["out_w"] = dense(64, (1, 64, 1, 1))
    params["out_b"] = jnp.zeros((1,), jnp.float32)
    return params


# --------------------------------------------------------------------------
# Full UNETR_2D forward
# --------------------------------------------------------------------------
def unetr_2d_forward(params, inputs, cf):
    B, C, H, W = inputs.shape
    P = cf["patch_size"]
    pad_h = (P - H % P) % P
    pad_w = (P - W % P) % P
    x = jnp.pad(inputs.astype(jnp.float32), ((0, 0), (0, 0), (0, pad_h), (0, pad_w)))
    new_h, new_w = H + pad_h, W + pad_w
    nH, nW = new_h // P, new_w // P
    n_patches = nH * nW

    # unfold/unfold + permute + view  ->  (B, num_patches, P*P*C)
    patches = x.reshape(B, C, nH, P, nW, P).transpose(0, 1, 2, 4, 3, 5)
    patches = patches.reshape(B, C, n_patches, P * P).transpose(0, 2, 1, 3)
    patches = patches.reshape(B, n_patches, P * P * C)

    # patch embedding + positional embedding
    pe = matmul_bias_act(patches.reshape(B * n_patches, P * P * C),
                         params["patch_embed_w"], params["patch_embed_b"])
    x_tok = pe.reshape(B, n_patches, cf["hidden_dim"]) + params["pos_embed"][None, :n_patches, :]

    # transformer encoder, skips after layers 3, 6, 9, 12
    def body(carry, p):
        y = transformer_layer(carry, p, cf["num_heads"])
        return y, y

    _, layer_outs = jax.lax.scan(body, x_tok, params["encoder"])
    z3, z6, z9, z12 = (layer_outs[i - 1] for i in (3, 6, 9, 12))

    # raw .view reshapes, exactly as the PyTorch code does
    z0 = patches.reshape(B, cf["num_channels"], new_h, new_w)
    s_grid = int(math.isqrt(n_patches))
    new_shape = (B, cf["hidden_dim"], s_grid, s_grid)
    z3, z6, z9, z12 = (z.reshape(new_shape) for z in (z3, z6, z9, z12))

    def seq(t, blocks):
        for kind, p in blocks:
            t = deconv2x2(t, p["w"], p["b"]) if kind == "d" else conv_block_apply(t, p)
        return t

    x = deconv2x2(z12, params["d1"]["w"], params["d1"]["b"])
    s = seq(z9, [("d", params["s1"][0]), ("c", params["s1"][1])])
    x = seq(jnp.concatenate([x, s], axis=1),
            [("c", params["c1"][0]), ("c", params["c1"][1])])

    x = deconv2x2(x, params["d2"]["w"], params["d2"]["b"])
    s = seq(z6, [("d", params["s2"][0]), ("c", params["s2"][1]),
                 ("d", params["s2"][2]), ("c", params["s2"][3])])
    x = seq(jnp.concatenate([x, s], axis=1),
            [("c", params["c2"][0]), ("c", params["c2"][1])])

    x = deconv2x2(x, params["d3"]["w"], params["d3"]["b"])
    s = seq(z3, [("d", params["s3"][0]), ("c", params["s3"][1]),
                 ("d", params["s3"][2]), ("c", params["s3"][3]),
                 ("d", params["s3"][4]), ("c", params["s3"][5])])
    x = seq(jnp.concatenate([x, s], axis=1),
            [("c", params["c3"][0]), ("c", params["c3"][1])])

    x = deconv2x2(x, params["d4"]["w"], params["d4"]["b"])
    s = seq(z0, [("c", params["s4"][0]), ("c", params["s4"][1])])
    # TODO(synk): reference hard-codes F.interpolate(size=(1000, 1000)); generalized
    # to the padded input size so the module runs at small test shapes.
    x_up = bilinear_resize_align_corners(x, new_h, new_w)
    x = seq(jnp.concatenate([x_up, s], axis=1),
            [("c", params["c4"][0]), ("c", params["c4"][1])])

    return conv1x1(x, params["out_w"], params["out_b"])


# --------------------------------------------------------------------------
# Main: deterministic small-shape test
# --------------------------------------------------------------------------
if __name__ == "__main__":
    cf = {
        "image_size": 16, "num_layers": 12, "hidden_dim": 64, "mlp_dim": 128,
        "num_heads": 4, "dropout_rate": 0.1, "patch_size": 4, "num_channels": 1,
    }
    cf["num_patches"] = (cf["image_size"] // cf["patch_size"]) ** 2

    key = jax.random.PRNGKey(0)
    k_param, k_in, k_chk = jax.random.split(key, 3)
    params = init_params(k_param, cf)
    inputs = jax.random.normal(
        k_in, (2, cf["num_channels"], cf["image_size"], cf["image_size"]), jnp.float32)

    # ---- small self-checks of each Pallas kernel against jnp references ----
    ka, kb, kq = jax.random.split(k_chk, 3)
    a = jax.random.normal(ka, (48, 96), jnp.float32)
    b = jax.random.normal(kb, (96, 80), jnp.float32)
    bias = jnp.arange(80, dtype=jnp.float32) * 0.01
    got = matmul_bias_act(a, b, bias, act="relu")
    want = jnp.maximum(a @ b + bias, 0.0)
    assert jnp.allclose(got, want, atol=1e-4, rtol=1e-4)

    q = jax.random.normal(kq, (6, 5, 16), jnp.float32)
    got = mha_attention(q, q, q, 0.25)
    want = jax.nn.softmax(0.25 * jnp.einsum("bqd,bkd->bqk", q, q), axis=-1) @ q
    assert jnp.allclose(got, want, atol=1e-4, rtol=1e-4)

    x2d = jax.random.normal(ka, (24, 64), jnp.float32)
    got = layer_norm(x2d, jnp.ones((64,), jnp.float32), jnp.zeros((64,), jnp.float32))
    mu = x2d.mean(-1, keepdims=True)
    var = ((x2d - mu) ** 2).mean(-1, keepdims=True)
    want = (x2d - mu) * jax.lax.rsqrt(var + 1e-5)
    assert jnp.allclose(got, want, atol=1e-4, rtol=1e-4)

    # ---- run the full UNETR_2D forward ----
    forward = jax.jit(lambda p, x: unetr_2d_forward(p, x, cf))
    out = forward(params, inputs)
    out = jax.block_until_ready(out)
    assert out.shape == (2, 1, cf["image_size"], cf["image_size"]), out.shape
    assert bool(jnp.all(jnp.isfinite(out)))
    print("KERNEL_OK")
</pallas_src>

<mosaic_0001>
module attributes {stable_mosaic.version = 11 : i64} {
  func.func @_matmul_kernel(%arg0: i32, %arg1: i32, %arg2: i32, %arg3: memref<48x256xf32, #tpu.memory_space<vmem>>, %arg4: memref<256x128xf32, #tpu.memory_space<vmem>>, %arg5: memref<1x128xf32, #tpu.memory_space<vmem>>, %arg6: memref<48x128xf32, #tpu.memory_space<vmem>>, %arg7: memref<48x128xf32, #tpu.memory_space<vmem>>) attributes {dimension_semantics = [#tpu.dimension_semantics<parallel>, #tpu.dimension_semantics<parallel>, #tpu.dimension_semantics<arbitrary>], iteration_bounds = array<i64: 1, 1, 1>, scalar_prefetch = 0 : i64, scratch_operands = 1 : i64, tpu.core_type = #tpu.core_type<tc>, window_params = [{transform_indices = @transform_0, window_bounds = array<i64: 48, 256>}, {transform_indices = @transform_1, window_bounds = array<i64: 256, 128>}, {transform_indices = @transform_2, window_bounds = array<i64: 1, 128>}, {transform_indices = @transform_3, window_bounds = array<i64: 48, 128>}]} {
    %c0_i32 = arith.constant 0 : i32
    %0 = arith.cmpi eq, %arg2, %c0_i32 : i32
    %1 = arith.extui %0 : i1 to i32
    %c0_i32_0 = arith.constant 0 : i32
    %2 = arith.cmpi ne, %1, %c0_i32_0 : i32
    scf.if %2 {
      %cst_10 = arith.constant 0.000000e+00 : f32
      %12 = vector.broadcast %cst_10 : f32 to vector<48x128xf32>
      %c0_11 = arith.constant 0 : index
      %c0_12 = arith.constant 0 : index
      %13 = vector.load %arg7[%c0_11, %c0_12] : memref<48x128xf32, #tpu.memory_space<vmem>>, vector<48x128xf32>
      tpu.vector_store %arg7[%c0_11, %c0_12], %12 {strides = array<i32>} : memref<48x128xf32, #tpu.memory_space<vmem>>, vector<48x128xf32>,
    } else {
    }
    %c0 = arith.constant 0 : index
    %c0_1 = arith.constant 0 : index
    %3 = vector.load %arg7[%c0, %c0_1] : memref<48x128xf32, #tpu.memory_space<vmem>>, vector<48x128xf32>
    %c0_2 = arith.constant 0 : index
    %c0_3 = arith.constant 0 : index
    %4 = vector.load %arg3[%c0_2, %c0_3] : memref<48x256xf32, #tpu.memory_space<vmem>>, vector<48x256xf32>
    %c0_4 = arith.constant 0 : index
    %c0_5 = arith.constant 0 : index
    %5 = vector.load %arg4[%c0_4, %c0_5] : memref<256x128xf32, #tpu.memory_space<vmem>>, vector<256x128xf32>
    %cst = arith.constant dense<0.000000e+00> : vector<48x128xf32>
    %6 = tpu.matmul %4, %5, %cst {dimension_numbers = #tpu.dot_dimension_numbers<[1], [0], [0], [1], [0, 0, 1, 1], [], []>} : vector<48x256xf32>, vector<256x128xf32>, vector<48x128xf32> -> vector<48x128xf32>
    %7 = arith.addf %3, %6 : vector<48x128xf32>
    %c0_6 = arith.constant 0 : index
    %c0_7 = arith.constant 0 : index
    %8 = vector.load %arg7[%c0_6, %c0_7] : memref<48x128xf32, #tpu.memory_space<vmem>>, vector<48x128xf32>
    tpu.vector_store %arg7[%c0_6, %c0_7], %7 {strides = array<i32>} : memref<48x128xf32, #tpu.memory_space<vmem>>, vector<48x128xf32>,
    %c0_i32_8 = arith.constant 0 : i32
    %9 = arith.cmpi eq, %arg2, %c0_i32_8 : i32
    %10 = arith.extui %9 : i1 to i32
    %c0_i32_9 = arith.constant 0 : i32
    %11 = arith.cmpi ne, %10, %c0_i32_9 : i32
    scf.if %11 {
      %c0_10 = arith.constant 0 : index
      %c0_11 = arith.constant 0 : index
      %12 = vector.load %arg7[%c0_10, %c0_11] : memref<48x128xf32, #tpu.memory_space<vmem>>, vector<48x128xf32>
      %c0_12 = arith.constant 0 : index
      %c0_13 = arith.constant 0 : index
      %13 = vector.load %arg5[%c0_12, %c0_13] : memref<1x128xf32, #tpu.memory_space<vmem>>, vector<1x128xf32>
      %14 = vector.broadcast %13 : vector<1x128xf32> to vector<48x128xf32>
      %15 = arith.addf %12, %14 : vector<48x128xf32>
      %cst_14 = arith.constant 0.000000e+00 : f32
      %16 = vector.broadcast %cst_14 : f32 to vector<48x128xf32>
      %17 = arith.maximumf %15, %16 : vector<48x128xf32>
      %c0_15 = arith.constant 0 : index
      %c0_16 = arith.constant 0 : index
      %18 = vector.load %arg6[%c0_15, %c0_16] : memref<48x128xf32, #tpu.memory_space<vmem>>, vector<48x128xf32>
      tpu.vector_store %arg6[%c0_15, %c0_16], %17 {strides = array<i32>} : memref<48x128xf32, #tpu.memory_space<vmem>>, vector<48x128xf32>,
    } else {
    }
    return
  }
  func.func @transform_0(%arg0: i32, %arg1: i32, %arg2: i32) -> (i32, i32) {
    %c0_i32 = arith.constant 0 : i32
    return %arg0, %arg2 : i32, i32
  }
  func.func @transform_1(%arg0: i32, %arg1: i32, %arg2: i32) -> (i32, i32) {
    %c0_i32 = arith.constant 0 : i32
    return %arg2, %arg1 : i32, i32
  }
  func.func @transform_2(%arg0: i32, %arg1: i32, %arg2: i32) -> (i32, i32) {
    %c0_i32 = arith.constant 0 : i32
    %c0_i32_0 = arith.constant 0 : i32
    return %c0_i32, %arg1 : i32, i32
  }
  func.func @transform_3(%arg0: i32, %arg1: i32, %arg2: i32) -> (i32, i32) {
    %c0_i32 = arith.constant 0 : i32
    return %arg0, %arg1 : i32, i32
  }
}

</mosaic_0001>

<llo_original>
// kernel: tpu_custom_call.1
$region0: #{tpu_custom_call.1}
  #allocation0 [shape = 'u32[]', space=smem, size = 0x4, offset = 0x4, fixed_abs, tag = 'smem constant byte address 0x4 - core index']
  #allocation1 [shape = 'u32[72,128]{1,0:T(1,128)}', space=vmem, size = 0x9000, scoped, tag = 'internal scratch']
  #allocation2 [shape = 'f32[48,128]{1,0:T(8,128)}', space=vmem, size = 0x6000, scoped, tag = 'scratch operand']
  %s0 = inlined_call_operand.hbm [shape: f32[48,256], index: 0, kind: input, shape index: {}]
  %s1 = inlined_call_operand.hbm [shape: f32[256,128], index: 1, kind: input, shape index: {}]
  %s2 = inlined_call_operand.vmem [shape: f32[1,128], index: 2, kind: input, shape index: {}]
  %s3 = inlined_call_operand.hbm [shape: f32[48,128], index: 3, kind: output, shape index: {}]
  %s4 = sld [smem:[#allocation0]]
  $region38: #{tpu_custom_call.1} parent=0
    _
  %s6 = ssub.s32 1, %s4
  %s7 = scalar_select 0, %s6, %s4
  $region1: #{tpu_custom_call.1} parent=0
    #allocation3 [shape = 'u8[49152]{0}', space=vmem, size = 0xc000, scoped, tag = 'input window, operand 0, single buffered']
    #allocation4 [shape = 's32[1]{0}', space=sflag, size = 0x4, scoped, tag = 'scoped memory for tpu_custom_call.1']
    #allocation5 [shape = 's32[1]{0}', space=sflag, size = 0x4, scoped, tag = 'scoped memory for tpu_custom_call.1']
    #allocation6 [shape = 'u8[131072]{0}', space=vmem, size = 0x20000, scoped, tag = 'input window, operand 1, single buffered']
    #allocation7 [shape = 's32[1]{0}', space=sflag, size = 0x4, scoped, tag = 'scoped memory for tpu_custom_call.1']
    #allocation8 [shape = 'u8[24576]{0}', space=vmem, size = 0x6000, scoped, tag = 'output window, operand 0, single buffered']
    %8 = vsyncpa [#allocation4], 0
    %9 = vsyncpa [#allocation7], 0
    %10 = vsyncpa [#allocation5], 0
    // Predicated region
    $region2: #{tpu_custom_call.1} parent=1 // pred_check
      _
    $region3: #{tpu_custom_call.1} parent=1 // pred_check_branch
      %12 = sbr.rel (0) target = $region5
    $region4: #{tpu_custom_call.1} parent=1 // pred_region
      %14 = vsyncadd [#allocation4], 0
      %s15 = sshll.u32 %s0, 4
      %s16 = int_to_ptr.hbm [resolvable:$true] %s15
      %s17 = sshll.u32 [#allocation3], 4
      %s18 = int_to_ptr.vmem [resolvable:$true] %s17
      %23 = dma.hbm_to_vmem [thread:$0]  %s16, 1536, %s18, [#allocation4], 256, 256, 16
    $region5: #{tpu_custom_call.1} parent=1 // pred_fallthru
      _
    // Predicated region
    $region6: #{tpu_custom_call.1} parent=1 // pred_check
      _
    $region7: #{tpu_custom_call.1} parent=1 // pred_check_branch
      %25 = sbr.rel (0) target = $region9
    $region8: #{tpu_custom_call.1} parent=1 // pred_region
      %27 = vsyncadd [#allocation7], 0
      %s28 = sshll.u32 %s1, 4
      %s29 = int_to_ptr.hbm [resolvable:$true] %s28
      %s30 = sshll.u32 [#allocation6], 4
      %s31 = int_to_ptr.vmem [resolvable:$true] %s30
      %36 = dma.hbm_to_vmem [thread:$0]  %s29, 4096, %s31, [#allocation7], 128, 128, 8
    $region9: #{tpu_custom_call.1} parent=1 // pred_fallthru
      _
    // Predicated region
    $region10: #{tpu_custom_call.1} parent=1 // pred_check
      _
    $region11: #{tpu_custom_call.1} parent=1 // pred_check_branch
      %38 = sbr.rel (0) target = $region13
    $region12: #{tpu_custom_call.1} parent=1 // pred_region
      _
    $region13: #{tpu_custom_call.1} parent=1 // pred_fallthru
      _
    // Predicated region
    $region14: #{tpu_custom_call.1} parent=1 // pred_check
      _
    $region15: #{tpu_custom_call.1} parent=1 // pred_check_branch
      %40 = sbr.rel (0) target = $region17
    $region16: #{tpu_custom_call.1} parent=1 // pred_region
      %42 = dma.done [#allocation4], 1536
    $region17: #{tpu_custom_call.1} parent=1 // pred_fallthru
      _
    // Predicated region
    $region18: #{tpu_custom_call.1} parent=1 // pred_check
      _
    $region19: #{tpu_custom_call.1} parent=1 // pred_check_branch
      %44 = sbr.rel (0) target = $region21
    $region20: #{tpu_custom_call.1} parent=1 // pred_region
      %46 = dma.done [#allocation7], 4096
    $region21: #{tpu_custom_call.1} parent=1 // pred_fallthru
      _
    %p47 = scmp.eq.s32.totalorder 0, 0
    // Predicated region
    $region22: #{tpu_custom_call.1} parent=1 // pred_check
      %p48 = pneg %p47
    $region23: #{tpu_custom_call.1} parent=1 // pred_check_branch
      %50 = sbr.rel (%p48) target = $region25
    $region24: #{tpu_custom_call.1} parent=1 // pred_region
      %51 = vst [vmem:[#allocation2] sm:$0xff] 0.0
      %52 = vst [vmem:[#allocation2 + $0x8] sm:$0xff] 0.0
      %53 = vst [vmem:[#allocation2 + $0x10] sm:$0xff] 0.0
      %54 = vst [vmem:[#allocation2 + $0x18] sm:$0xff] 0.0
      %55 = vst [vmem:[#allocation2 + $0x20] sm:$0xff] 0.0
      %56 = vst [vmem:[#allocation2 + $0x28] sm:$0xff] 0.0
    $region25: #{tpu_custom_call.1} parent=1 // pred_fallthru
      _
    %v57 = vld [vmem:[#allocation2] sm:$0xff]
    %v58 = vld [vmem:[#allocation2 + $0x8] sm:$0xff]
    %v59 = vld [vmem:[#allocation2 + $0x10] sm:$0xff]
    %v60 = vld [vmem:[#allocation2 + $0x18] sm:$0xff]
    %v61 = vld [vmem:[#allocation2 + $0x20] sm:$0xff]
    %v62 = vld [vmem:[#allocation2 + $0x28] sm:$0xff]
    %v63 = vld [vmem:[#allocation3] sm:$0xff]
    %v64 = vld [vmem:[#allocation3 + $0x8] sm:$0xff]
    %v65 = vld [vmem:[#allocation3 + $0x10] sm:$0xff]
    %v66 = vld [vmem:[#allocation3 + $0x18] sm:$0xff]
    %v67 = vld [vmem:[#allocation3 + $0x20] sm:$0xff]
    %v68 = vld [vmem:[#allocation3 + $0x28] sm:$0xff]
    %v69 = vld [vmem:[#allocation3 + $0x30] sm:$0xff]
    %v70 = vld [vmem:[#allocation3 + $0x38] sm:$0xff]
    %v71 = vld [vmem:[#allocation3 + $0x40] sm:$0xff]
    %v72 = vld [vmem:[#allocation3 + $0x48] sm:$0xff]
    %v73 = vld [vmem:[#allocation3 + $0x50] sm:$0xff]
    %v74 = vld [vmem:[#allocation3 + $0x58] sm:$0xff]
    %v75 = vld [vmem:[#allocation6] sm:$0xff]
    %v76 = vld [vmem:[#allocation6 + $0x8] sm:$0xff]
    %v77 = vld [vmem:[#allocation6 + $0x10] sm:$0xff]
    %v78 = vld [vmem:[#allocation6 + $0x18] sm:$0xff]
    %v79 = vld [vmem:[#allocation6 + $0x20] sm:$0xff]
    %v80 = vld [vmem:[#allocation6 + $0x28] sm:$0xff]
    %v81 = vld [vmem:[#allocation6 + $0x30] sm:$0xff]
    %v82 = vld [vmem:[#allocation6 + $0x38] sm:$0xff]
    %v83 = vld [vmem:[#allocation6 + $0x40] sm:$0xff]
    %v84 = vld [vmem:[#allocation6 + $0x48] sm:$0xff]
    %v85 = vld [vmem:[#allocation6 + $0x50] sm:$0xff]
    %v86 = vld [vmem:[#allocation6 + $0x58] sm:$0xff]
    %v87 = vld [vmem:[#allocation6 + $0x60] sm:$0xff]
    %v88 = vld [vmem:[#allocation6 + $0x68] sm:$0xff]
    %v89 = vld [vmem:[#allocation6 + $0x70] sm:$0xff]
    %v90 = vld [vmem:[#allocation6 + $0x78] sm:$0xff]
    %v91 = vld [vmem:[#allocation6 + $0x80] sm:$0xff]
    %v92 = vld [vmem:[#allocation6 + $0x88] sm:$0xff]
    %v93 = vld [vmem:[#allocation6 + $0x90] sm:$0xff]
    %v94 = vld [vmem:[#allocation6 + $0x98] sm:$0xff]
    %v95 = vld [vmem:[#allocation6 + $0xa0] sm:$0xff]
    %v96 = vld [vmem:[#allocation6 + $0xa8] sm:$0xff]
    %v97 = vld [vmem:[#allocation6 + $0xb0] sm:$0xff]
    %v98 = vld [vmem:[#allocation6 + $0xb8] sm:$0xff]
    %v99 = vld [vmem:[#allocation6 + $0xc0] sm:$0xff]
    %v100 = vld [vmem:[#allocation6 + $0xc8] sm:$0xff]
    %v101 = vld [vmem:[#allocation6 + $0xd0] sm:$0xff]
    %v102 = vld [vmem:[#allocation6 + $0xd8] sm:$0xff]
    %v103 = vld [vmem:[#allocation6 + $0xe0] sm:$0xff]
    %v104 = vld [vmem:[#allocation6 + $0xe8] sm:$0xff]
    %v105 = vld [vmem:[#allocation6 + $0xf0] sm:$0xff]
    %v106 = vld [vmem:[#allocation6 + $0xf8] sm:$0xff]
    %107 = vmatpush.msra.mxu0 %v90
    %108 = vmatpush.msra.mxu0 %v89
    %109 = vmatpush.msra.mxu0 %v88
    %110 = vmatpush.msra.mxu0 %v87
    %111 = vmatpush.msra.mxu0 %v86
    %112 = vmatpush.msra.mxu0 %v85
    %113 = vmatpush.msra.mxu0 %v84
    %114 = vmatpush.msra.mxu0 %v83
    %115 = vmatpush.msra.mxu0 %v82
    %116 = vmatpush.msra.mxu0 %v81
    %117 = vmatpush.msra.mxu0 %v80
    %118 = vmatpush.msra.mxu0 %v79
    %119 = vmatpush.msra.mxu0 %v78
    %120 = vmatpush.msra.mxu0 %v77
    %121 = vmatpush.msra.mxu0 %v76
    %122 = vmatpush.msra.mxu0 %v75
    %123 = vmatmul.f32.gmra.mxu0 %v63
    %v124 = vpop.f32.mrf.mxu0
    %v125 = vadd.f32 0.0, %v124
    %126 = vmatmul.f32.gmra.mxu0 %v65
    %v127 = vpop.f32.mrf.mxu0
    %v128 = vadd.f32 0.0, %v127
    %129 = vmatmul.f32.gmra.mxu0 %v67
    %v130 = vpop.f32.mrf.mxu0
    %v131 = vadd.f32 0.0, %v130
    %132 = vmatmul.f32.gmra.mxu0 %v69
    %v133 = vpop.f32.mrf.mxu0
    %v134 = vadd.f32 0.0, %v133
    %135 = vmatmul.f32.gmra.mxu0 %v71
    %v136 = vpop.f32.mrf.mxu0
    %v137 = vadd.f32 0.0, %v136
    %138 = vmatmul.f32.gmra.mxu0 %v73
    %v139 = vpop.f32.mrf.mxu0
    %v140 = vadd.f32 0.0, %v139
    %141 = vdwg.mxu0
    %142 = vmatpush.msra.mxu0 %v106
    %143 = vmatpush.msra.mxu0 %v105
    %144 = vmatpush.msra.mxu0 %v104
    %145 = vmatpush.msra.mxu0 %v103
    %146 = vmatpush.msra.mxu0 %v102
    %147 = vmatpush.msra.mxu0 %v101
    %148 = vmatpush.msra.mxu0 %v100
    %149 = vmatpush.msra.mxu0 %v99
    %150 = vmatpush.msra.mxu0 %v98
    %151 = vmatpush.msra.mxu0 %v97
    %152 = vmatpush.msra.mxu0 %v96
    %153 = vmatpush.msra.mxu0 %v95
    %154 = vmatpush.msra.mxu0 %v94
    %155 = vmatpush.msra.mxu0 %v93
    %156 = vmatpush.msra.mxu0 %v92
    %157 = vmatpush.msra.mxu0 %v91
    %158 = vmatmul.f32.gmra.mxu0 %v64
    %v159 = vpop.f32.mrf.mxu0
    %v160 = vadd.f32 %v125, %v159
    %161 = vmatmul.f32.gmra.mxu0 %v66
    %v162 = vpop.f32.mrf.mxu0
    %v163 = vadd.f32 %v128, %v162
    %164 = vmatmul.f32.gmra.mxu0 %v68
    %v165 = vpop.f32.mrf.mxu0
    %v166 = vadd.f32 %v131, %v165
    %167 = vmatmul.f32.gmra.mxu0 %v70
    %v168 = vpop.f32.mrf.mxu0
    %v169 = vadd.f32 %v134, %v168
    %170 = vmatmul.f32.gmra.mxu0 %v72
    %v171 = vpop.f32.mrf.mxu0
    %v172 = vadd.f32 %v137, %v171
    %173 = vmatmul.f32.gmra.mxu0 %v74
    %v174 = vpop.f32.mrf.mxu0
    %v175 = vadd.f32 %v140, %v174
    %176 = vdwg.mxu0
    %v177 = vadd.f32 %v57, %v160
    %v178 = vadd.f32 %v58, %v163
    %v179 = vadd.f32 %v59, %v166
    %v180 = vadd.f32 %v60, %v169
    %v181 = vadd.f32 %v61, %v172
    %v182 = vadd.f32 %v62, %v175
    %183 = vst [vmem:[#allocation2] sm:$0xff] %v177
    %184 = vst [vmem:[#allocation2 + $0x8] sm:$0xff] %v178
    %185 = vst [vmem:[#allocation2 + $0x10] sm:$0xff] %v179
    %186 = vst [vmem:[#allocation2 + $0x18] sm:$0xff] %v180
    %187 = vst [vmem:[#allocation2 + $0x20] sm:$0xff] %v181
    %188 = vst [vmem:[#allocation2 + $0x28] sm:$0xff] %v182
    // Predicated region
    $region26: #{tpu_custom_call.1} parent=1 // pred_check
      %p189 = pneg %p47
    $region27: #{tpu_custom_call.1} parent=1 // pred_check_branch
      %191 = sbr.rel (%p189) target = $region29
    $region28: #{tpu_custom_call.1} parent=1 // pred_region
      %v192 = vld [vmem:[#allocation2] sm:$0xff]
      %v193 = vld [vmem:[#allocation2 + $0x8] sm:$0xff]
      %v194 = vld [vmem:[#allocation2 + $0x10] sm:$0xff]
      %v195 = vld [vmem:[#allocation2 + $0x18] sm:$0xff]
      %v196 = vld [vmem:[#allocation2 + $0x20] sm:$0xff]
      %v197 = vld [vmem:[#allocation2 + $0x28] sm:$0xff]
      %v198 = vld [vmem:[%s2] sm:$0x1]
      %v200 = vperm.slane %v198, 0
      %v202 = vadd.f32 %v192, %v200
      %v203 = vadd.f32 %v193, %v200
      %v204 = vadd.f32 %v194, %v200
      %v205 = vadd.f32 %v195, %v200
      %v206 = vadd.f32 %v196, %v200
      %v207 = vadd.f32 %v197, %v200
      %v208 = vmax.f32 %v202, 0.0
      %v209 = vmax.f32 %v203, 0.0
      %v210 = vmax.f32 %v204, 0.0
      %v211 = vmax.f32 %v205, 0.0
      %v212 = vmax.f32 %v206, 0.0
      %v213 = vmax.f32 %v207, 0.0
      %214 = vst [vmem:[#allocation8] sm:$0xff] %v208
      %215 = vst [vmem:[#allocation8 + $0x8] sm:$0xff] %v209
      %216 = vst [vmem:[#allocation8 + $0x10] sm:$0xff] %v210
      %217 = vst [vmem:[#allocation8 + $0x18] sm:$0xff] %v211
      %218 = vst [vmem:[#allocation8 + $0x20] sm:$0xff] %v212
      %219 = vst [vmem:[#allocation8 + $0x28] sm:$0xff] %v213
    $region29: #{tpu_custom_call.1} parent=1 // pred_fallthru
      _
    // Predicated region
    $region30: #{tpu_custom_call.1} parent=1 // pred_check
      _
    $region31: #{tpu_custom_call.1} parent=1 // pred_check_branch
      %221 = sbr.rel (0) target = $region33
    $region32: #{tpu_custom_call.1} parent=1 // pred_region
      %223 = vsyncadd [#allocation5], 0
      %s224 = sshll.u32 [#allocation8], 4
      %s225 = int_to_ptr.vmem [resolvable:$true] %s224
      %s226 = sshll.u32 %s3, 4
      %s227 = int_to_ptr.hbm [resolvable:$true] %s226
      %232 = dma.vmem_to_hbm [thread:$0]  %s225, 768, %s227, [#allocation5], 128, 128, 8
    $region33: #{tpu_custom_call.1} parent=1 // pred_fallthru
      _
    // Predicated region
    $region34: #{tpu_custom_call.1} parent=1 // pred_check
      _
    $region35: #{tpu_custom_call.1} parent=1 // pred_check_branch
      %234 = sbr.rel (0) target = $region37
    $region36: #{tpu_custom_call.1} parent=1 // pred_region
      %236 = dma.done [#allocation5], 768
    $region37: #{tpu_custom_call.1} parent=1 // pred_fallthru
      _
    %237 = vsyncpa [#allocation4], 1
    %238 = vsyncpa [#allocation7], 1
    %239 = vsyncpa [#allocation5], 1

</llo_original>
